<compile_context>
chip_gen: v7x
topology: tpu7x:2x2x1
jax: 0.10.0
libtpu: 0.0.40
codegen_flags: <defaults>
</compile_context>

<pallas_src>
import math

import jax
import jax.numpy as jnp
from jax import lax
from jax.experimental import pallas as pl
from jax.experimental.pallas import tpu as pltpu


def _round_up(x, m):
    return ((x + m - 1) // m) * m


def _vmem_capacity_bytes():
    try:
        return int(pltpu.get_tpu_info().vmem_capacity_bytes)
    except Exception:
        return 64 * 1024 * 1024  # conservative default (v7x per-TC VMEM)


def _proj_kernel_n(x_ref, w_ref, o_ref):
    # Each grid step owns one disjoint output slice: direct store, no RMW.
    o_ref[...] = jnp.dot(
        x_ref[...], w_ref[...], preferred_element_type=jnp.float32
    ).astype(o_ref.dtype)


def _make_proj_kernel_nk(rem, num_k):
    def _proj_kernel_nk(x_ref, w_ref, o_ref, acc_ref):
        k = pl.program_id(1)

        @pl.when(k == 0)
        def _():
            acc_ref[...] = jnp.zeros_like(acc_ref)

        w = w_ref[...]
        if rem:
            # Ragged K tail: zero the garbage rows of the partial last weight
            # block (x's tail is already zero-padded by the wrapper), so we
            # never jnp.pad the full weight in HBM.
            rows = lax.broadcasted_iota(jnp.int32, w.shape, 0)
            keep = jnp.logical_or(rows < rem, k != num_k - 1)
            w = jnp.where(keep, w, jnp.zeros_like(w))

        acc_ref[...] += jnp.dot(x_ref[...], w, preferred_element_type=jnp.float32)

        @pl.when(k == pl.num_programs(1) - 1)
        def _():
            o_ref[...] = acc_ref[...].astype(o_ref.dtype)

    return _proj_kernel_nk


def random_projection_forward(x, weight):
    """y = flatten(x) @ weight (row-major flatten, like torch.flatten).

    Pass `weight` in bf16 (cast once at module init) to halve the dominant
    HBM read; accumulation stays f32 either way.
    """
    assert x.ndim == 3, "Input must be a 3D tensor"
    dim_in, dim_out = weight.shape
    assert math.prod(x.shape) == dim_in, "prod(x.shape) must equal weight.shape[0]"

    # Keep the dot homogeneous / MXU-friendly: x follows the weight's
    # streaming dtype (casting dim_in scalars is negligible next to the
    # weight read).
    x_flat = x.reshape(1, dim_in)  # row-major flatten == torch.flatten
    if x_flat.dtype != weight.dtype:
        x_flat = x_flat.astype(weight.dtype)

    out_dtype = jnp.result_type(x.dtype, weight.dtype)
    out_item = jnp.dtype(out_dtype).itemsize
    w_item = jnp.dtype(weight.dtype).itemsize
    x_item = jnp.dtype(x_flat.dtype).itemsize

    dim_out_p = _round_up(dim_out, 128)

    # Generation-aware VMEM budgeting: ~1/4 of per-core VMEM per weight slab
    # (double-buffered -> ~1/2 of VMEM), leaving room for x, output, headroom.
    vmem_cap = _vmem_capacity_bytes()
    slab_budget = max(4 * 1024 * 1024, vmem_cap // 4)

    # Primary path tile width: largest 128-multiple whose full-depth slab fits
    # the budget, capped so the grid keeps >= ~8 steps when dim_out allows it
    # (v7x dual-TC sharding + DMA pipelining need several blocks to overlap).
    slab_tn = (slab_budget // max(dim_in * w_item, 1)) // 128 * 128
    step_cap_tn = max(128, (dim_out_p // 8) // 128 * 128)
    tn = min(slab_tn, step_cap_tn, dim_out_p)

    cost = pl.CostEstimate(
        flops=2 * dim_in * dim_out,
        transcendentals=0,
        bytes_accessed=dim_in * dim_out * w_item + dim_in * x_item + dim_out * out_item,
    )

    if tn >= 128:
        # Primary path: N-tiled, fully parallel grid, no accumulator.
        grid = (pl.cdiv(dim_out_p, tn),)
        kernel = _proj_kernel_n
        x_arg = x_flat
        in_specs = [
            pl.BlockSpec((1, dim_in), lambda n: (0, 0)),    # x, resident in VMEM
            pl.BlockSpec((dim_in, tn), lambda n: (0, n)),   # full-depth weight slab
        ]
        out_specs = pl.BlockSpec((1, tn), lambda n: (0, n))
        scratch_shapes = []
        dim_sem = ("parallel",)
        slab_bytes = dim_in * tn * w_item
        x_buf_bytes = dim_in * x_item
        acc_bytes = 0
    else:
        # Fallback for very large dim_in: 2D (n, k) grid with f32 accumulator,
        # wide (512) output tiles for long contiguous weight-row DMAs.
        tn = min(512, dim_out_p)
        tk = max(128, (slab_budget // (tn * w_item)) // 128 * 128)
        tk = min(tk, _round_up(dim_in, 128))
        num_k = pl.cdiv(dim_in, tk)
        dim_in_p = num_k * tk
        rem = dim_in % tk
        if dim_in_p != dim_in:
            # Cheap: pads only dim_in scalars of x, never the full weight.
            x_flat = jnp.pad(x_flat, ((0, 0), (0, dim_in_p - dim_in)))
        grid = (pl.cdiv(dim_out_p, tn), num_k)
        kernel = _make_proj_kernel_nk(rem, num_k)
        x_arg = x_flat
        in_specs = [
            pl.BlockSpec((1, tk), lambda n, k: (0, k)),     # x chunk per K step
            pl.BlockSpec((tk, tn), lambda n, k: (k, n)),    # weight tile
        ]
        out_specs = pl.BlockSpec((1, tn), lambda n, k: (0, n))
        scratch_shapes = [pltpu.VMEM((1, tn), jnp.float32)]
        dim_sem = ("parallel", "arbitrary")
        slab_bytes = tk * tn * w_item
        x_buf_bytes = tk * x_item
        acc_bytes = tn * 4

    # Double-buffered slabs + x buffers + output tile + accumulator + headroom,
    # derived from the actual requirement and capped below physical VMEM.
    vmem_needed = (2 * slab_bytes + 2 * x_buf_bytes + 2 * tn * out_item
                   + acc_bytes + (2 << 20))
    vmem_limit = int(min(max(vmem_needed, 32 << 20), vmem_cap - (8 << 20)))

    out = pl.pallas_call(
        kernel,
        out_shape=jax.ShapeDtypeStruct((1, dim_out_p), out_dtype),
        grid_spec=pltpu.PrefetchScalarGridSpec(
            num_scalar_prefetch=0,
            grid=grid,
            in_specs=in_specs,
            out_specs=out_specs,
            scratch_shapes=scratch_shapes,
        ),
        compiler_params=pltpu.CompilerParams(
            dimension_semantics=dim_sem,
            vmem_limit_bytes=vmem_limit,
        ),
        cost_estimate=cost,
    )(x_arg, weight)

    return out[0, :dim_out]


if __name__ == "__main__":
    # Small shapes consistent with the module: x is 3D, dim_in = prod(x.shape).
    B, S, H = 2, 8, 16          # 2 * 8 * 16 = 256
    dim_in = B * S * H
    dim_out = 128

    key = jax.random.PRNGKey(0)
    kx, kw = jax.random.split(key)
    x = jax.random.normal(kx, (B, S, H), dtype=jnp.float32)
    # Deterministic stand-in for the torch.randn(dim_in, dim_out) buffer.
    weight = jax.random.normal(kw, (dim_in, dim_out), dtype=jnp.float32)

    # Reference in plain JAX.
    y_ref = x.reshape(-1) @ weight

    # f32 path: matches the PyTorch f32 buffer semantics.
    y = jax.block_until_ready(random_projection_forward(x, weight))
    assert y.shape == (dim_out,)
    assert jnp.allclose(y, y_ref, atol=1e-4, rtol=1e-4)

    # Opt-in bf16 weight streaming (halves HBM traffic; f32 accumulation).
    y_bf16 = jax.block_until_ready(
        random_projection_forward(x, weight.astype(jnp.bfloat16)))
    assert y_bf16.shape == (dim_out,)
    assert jnp.allclose(y_bf16, y_ref, atol=0.5, rtol=0.05)

    print("KERNEL_OK")
</pallas_src>

<mosaic_0001>
module attributes {stable_mosaic.version = 11 : i64} {
  func.func @_proj_kernel_n(%arg0: i32, %arg1: memref<1x256xf32, #tpu.memory_space<vmem>>, %arg2: memref<256x128xf32, #tpu.memory_space<vmem>>, %arg3: memref<1x128xf32, #tpu.memory_space<vmem>>) attributes {dimension_semantics = [#tpu.dimension_semantics<parallel>], iteration_bounds = array<i64: 1>, scalar_prefetch = 0 : i64, scratch_operands = 0 : i64, tpu.core_type = #tpu.core_type<tc>, window_params = [{pipeline_mode = #tpu.pipeline_mode<synchronous>, transform_indices = @transform_0, window_bounds = array<i64: 1, 256>}, {transform_indices = @transform_1, window_bounds = array<i64: 256, 128>}, {transform_indices = @transform_2, window_bounds = array<i64: 1, 128>}]} {
    %c0 = arith.constant 0 : index
    %c0_0 = arith.constant 0 : index
    %0 = vector.load %arg1[%c0, %c0_0] : memref<1x256xf32, #tpu.memory_space<vmem>>, vector<1x256xf32>
    %c0_1 = arith.constant 0 : index
    %c0_2 = arith.constant 0 : index
    %1 = vector.load %arg2[%c0_1, %c0_2] : memref<256x128xf32, #tpu.memory_space<vmem>>, vector<256x128xf32>
    %cst = arith.constant dense<0.000000e+00> : vector<1x128xf32>
    %2 = tpu.matmul %0, %1, %cst {dimension_numbers = #tpu.dot_dimension_numbers<[1], [0], [0], [1], [0, 0, 1, 1], [], []>} : vector<1x256xf32>, vector<256x128xf32>, vector<1x128xf32> -> vector<1x128xf32>
    %c0_3 = arith.constant 0 : index
    %c0_4 = arith.constant 0 : index
    %3 = vector.load %arg3[%c0_3, %c0_4] : memref<1x128xf32, #tpu.memory_space<vmem>>, vector<1x128xf32>
    tpu.vector_store %arg3[%c0_3, %c0_4], %2 {strides = array<i32>} : memref<1x128xf32, #tpu.memory_space<vmem>>, vector<1x128xf32>,
    return
  }
  func.func @transform_0(%arg0: i32) -> (i32, i32) {
    %c0_i32 = arith.constant 0 : i32
    %c0_i32_0 = arith.constant 0 : i32
    %c0_i32_1 = arith.constant 0 : i32
    return %c0_i32, %c0_i32_0 : i32, i32
  }
  func.func @transform_1(%arg0: i32) -> (i32, i32) {
    %c0_i32 = arith.constant 0 : i32
    %c0_i32_0 = arith.constant 0 : i32
    return %c0_i32, %arg0 : i32, i32
  }
  func.func @transform_2(%arg0: i32) -> (i32, i32) {
    %c0_i32 = arith.constant 0 : i32
    %c0_i32_0 = arith.constant 0 : i32
    return %c0_i32, %arg0 : i32, i32
  }
}

</mosaic_0001>

<llo_original>
// kernel: tpu_custom_call.1
$region0: #{tpu_custom_call.1}
  #allocation0 [shape = 'u32[]', space=smem, size = 0x4, offset = 0x4, fixed_abs, tag = 'smem constant byte address 0x4 - core index']
  #allocation1 [shape = 'u32[144,128]{1,0:T(1,128)}', space=vmem, size = 0x12000, scoped, tag = 'internal scratch']
  %s0 = inlined_call_operand.hbm [shape: f32[1,256], index: 0, kind: input, shape index: {}]
  %s1 = inlined_call_operand.hbm [shape: f32[256,128], index: 1, kind: input, shape index: {}]
  %s2 = inlined_call_operand.hbm [shape: f32[1,128], index: 2, kind: output, shape index: {}]
  %s3 = sld [smem:[#allocation0]]
  $region26: #{tpu_custom_call.1} parent=0
    _
  %s5 = ssub.s32 1, %s3
  %s6 = scalar_select 0, %s5, %s3
  $region1: #{tpu_custom_call.1} parent=0
    #allocation2 [shape = 'u8[1024]{0}', space=vmem, size = 0x400, scoped, tag = 'input window, operand 0, single buffered']
    #allocation3 [shape = 's32[1]{0}', space=sflag, size = 0x4, scoped, tag = 'scoped memory for tpu_custom_call.1']
    #allocation4 [shape = 's32[1]{0}', space=sflag, size = 0x4, scoped, tag = 'scoped memory for tpu_custom_call.1']
    #allocation5 [shape = 'u8[131072]{0}', space=vmem, size = 0x20000, scoped, tag = 'input window, operand 1, single buffered']
    #allocation6 [shape = 's32[1]{0}', space=sflag, size = 0x4, scoped, tag = 'scoped memory for tpu_custom_call.1']
    #allocation7 [shape = 'u8[512]{0}', space=vmem, size = 0x400, scoped, tag = 'output window, operand 0, single buffered']
    %7 = vsyncpa [#allocation3], 0
    %8 = vsyncpa [#allocation6], 0
    %9 = vsyncpa [#allocation4], 0
    // Predicated region
    $region2: #{tpu_custom_call.1} parent=1 // pred_check
      _
    $region3: #{tpu_custom_call.1} parent=1 // pred_check_branch
      %11 = sbr.rel (0) target = $region5
    $region4: #{tpu_custom_call.1} parent=1 // pred_region
      %s13 = ssub.s32 32, 32
      %14 = vsyncadd [#allocation3], %s13
      %s16 = sshll.u32 [#allocation2], 4
      %s17 = int_to_ptr.vmem [resolvable:$true] %s16
      %19 = dma.hbm_to_vmem [thread:$0]  %s0, 32, %s17, [#allocation3]
    $region5: #{tpu_custom_call.1} parent=1 // pred_fallthru
      _
    // Predicated region
    $region6: #{tpu_custom_call.1} parent=1 // pred_check
      _
    $region7: #{tpu_custom_call.1} parent=1 // pred_check_branch
      %21 = sbr.rel (0) target = $region9
    $region8: #{tpu_custom_call.1} parent=1 // pred_region
      %s23 = ssub.s32 4096, 4096
      %24 = vsyncadd [#allocation6], %s23
      %s25 = sshll.u32 [#allocation5], 4
      %s26 = int_to_ptr.vmem [resolvable:$true] %s25
      %31 = dma.hbm_to_vmem [thread:$0]  %s1, 4096, %s26, [#allocation6], 128, 128, 8
    $region9: #{tpu_custom_call.1} parent=1 // pred_fallthru
      _
    // Predicated region
    $region10: #{tpu_custom_call.1} parent=1 // pred_check
      _
    $region11: #{tpu_custom_call.1} parent=1 // pred_check_branch
      %33 = sbr.rel (0) target = $region13
    $region12: #{tpu_custom_call.1} parent=1 // pred_region
      %34 = dma.done [#allocation3], 32
    $region13: #{tpu_custom_call.1} parent=1 // pred_fallthru
      _
    // Predicated region
    $region14: #{tpu_custom_call.1} parent=1 // pred_check
      _
    $region15: #{tpu_custom_call.1} parent=1 // pred_check_branch
      %36 = sbr.rel (0) target = $region17
    $region16: #{tpu_custom_call.1} parent=1 // pred_region
      %37 = dma.done [#allocation6], 4096
    $region17: #{tpu_custom_call.1} parent=1 // pred_fallthru
      _
    %v38 = vld [vmem:[#allocation2] sm:$0x3]
    %v39 = vld [vmem:[#allocation5] sm:$0xff]
    %v40 = vld [vmem:[#allocation5 + $0x8] sm:$0xff]
    %v41 = vld [vmem:[#allocation5 + $0x10] sm:$0xff]
    %v42 = vld [vmem:[#allocation5 + $0x18] sm:$0xff]
    %v43 = vld [vmem:[#allocation5 + $0x20] sm:$0xff]
    %v44 = vld [vmem:[#allocation5 + $0x28] sm:$0xff]
    %v45 = vld [vmem:[#allocation5 + $0x30] sm:$0xff]
    %v46 = vld [vmem:[#allocation5 + $0x38] sm:$0xff]
    %v47 = vld [vmem:[#allocation5 + $0x40] sm:$0xff]
    %v48 = vld [vmem:[#allocation5 + $0x48] sm:$0xff]
    %v49 = vld [vmem:[#allocation5 + $0x50] sm:$0xff]
    %v50 = vld [vmem:[#allocation5 + $0x58] sm:$0xff]
    %v51 = vld [vmem:[#allocation5 + $0x60] sm:$0xff]
    %v52 = vld [vmem:[#allocation5 + $0x68] sm:$0xff]
    %v53 = vld [vmem:[#allocation5 + $0x70] sm:$0xff]
    %v54 = vld [vmem:[#allocation5 + $0x78] sm:$0xff]
    %v55 = vld [vmem:[#allocation5 + $0x80] sm:$0xff]
    %v56 = vld [vmem:[#allocation5 + $0x88] sm:$0xff]
    %v57 = vld [vmem:[#allocation5 + $0x90] sm:$0xff]
    %v58 = vld [vmem:[#allocation5 + $0x98] sm:$0xff]
    %v59 = vld [vmem:[#allocation5 + $0xa0] sm:$0xff]
    %v60 = vld [vmem:[#allocation5 + $0xa8] sm:$0xff]
    %v61 = vld [vmem:[#allocation5 + $0xb0] sm:$0xff]
    %v62 = vld [vmem:[#allocation5 + $0xb8] sm:$0xff]
    %v63 = vld [vmem:[#allocation5 + $0xc0] sm:$0xff]
    %v64 = vld [vmem:[#allocation5 + $0xc8] sm:$0xff]
    %v65 = vld [vmem:[#allocation5 + $0xd0] sm:$0xff]
    %v66 = vld [vmem:[#allocation5 + $0xd8] sm:$0xff]
    %v67 = vld [vmem:[#allocation5 + $0xe0] sm:$0xff]
    %v68 = vld [vmem:[#allocation5 + $0xe8] sm:$0xff]
    %v69 = vld [vmem:[#allocation5 + $0xf0] sm:$0xff]
    %v70 = vld [vmem:[#allocation5 + $0xf8] sm:$0xff]
    %v72 = vlaneseq
    %v73 = vshrl.u32 %v72, 7
    %v74 = vsub.s32 0, %v73
    %v75 = vrot.slane %v38, %v74
    %v76 = vlaneseq
    %v77 = vshrl.u32 %v76, 7
    %v78 = vsub.s32 1, %v77
    %v79 = vrot.slane %v38, %v78
    %82 = vmatprep.subr.mxu0 0.0
    %83 = vmatpush1.msra.mxu0 %v39
    %84 = vmatprep.subr.mxu0 0.0
    %85 = vmatpush1.msra.mxu0 %v40
    %86 = vmatprep.subr.mxu0 0.0
    %87 = vmatpush1.msra.mxu0 %v41
    %88 = vmatprep.subr.mxu0 0.0
    %89 = vmatpush1.msra.mxu0 %v42
    %90 = vmatprep.subr.mxu0 0.0
    %91 = vmatpush1.msra.mxu0 %v43
    %92 = vmatprep.subr.mxu0 0.0
    %93 = vmatpush1.msra.mxu0 %v44
    %94 = vmatprep.subr.mxu0 0.0
    %95 = vmatpush1.msra.mxu0 %v45
    %96 = vmatprep.subr.mxu0 0.0
    %97 = vmatpush1.msra.mxu0 %v46
    %98 = vmatprep.subr.mxu0 0.0
    %99 = vmatpush1.msra.mxu0 %v47
    %100 = vmatprep.subr.mxu0 0.0
    %101 = vmatpush1.msra.mxu0 %v48
    %102 = vmatprep.subr.mxu0 0.0
    %103 = vmatpush1.msra.mxu0 %v49
    %104 = vmatprep.subr.mxu0 0.0
    %105 = vmatpush1.msra.mxu0 %v50
    %106 = vmatprep.subr.mxu0 0.0
    %107 = vmatpush1.msra.mxu0 %v51
    %108 = vmatprep.subr.mxu0 0.0
    %109 = vmatpush1.msra.mxu0 %v52
    %110 = vmatprep.subr.mxu0 0.0
    %111 = vmatpush1.msra.mxu0 %v53
    %112 = vmatprep.subr.mxu0 0.0
    %113 = vmatpush1.msra.mxu0 %v54
    %114 = vmatprep.subr.mxu0 0.0
    %115 = vmatpush1.msra.mxu0 %v55
    %116 = vmatprep.subr.mxu0 0.0
    %117 = vmatpush1.msra.mxu0 %v56
    %118 = vmatprep.subr.mxu0 0.0
    %119 = vmatpush1.msra.mxu0 %v57
    %120 = vmatprep.subr.mxu0 0.0
    %121 = vmatpush1.msra.mxu0 %v58
    %122 = vmatprep.subr.mxu0 0.0
    %123 = vmatpush1.msra.mxu0 %v59
    %124 = vmatprep.subr.mxu0 0.0
    %125 = vmatpush1.msra.mxu0 %v60
    %126 = vmatprep.subr.mxu0 0.0
    %127 = vmatpush1.msra.mxu0 %v61
    %128 = vmatprep.subr.mxu0 0.0
    %129 = vmatpush1.msra.mxu0 %v62
    %130 = vmatprep.subr.mxu0 0.0
    %131 = vmatpush1.msra.mxu0 %v63
    %132 = vmatprep.subr.mxu0 0.0
    %133 = vmatpush1.msra.mxu0 %v64
    %134 = vmatprep.subr.mxu0 0.0
    %135 = vmatpush1.msra.mxu0 %v65
    %136 = vmatprep.subr.mxu0 0.0
    %137 = vmatpush1.msra.mxu0 %v66
    %138 = vmatprep.subr.mxu0 0.0
    %139 = vmatpush1.msra.mxu0 %v67
    %140 = vmatprep.subr.mxu0 0.0
    %141 = vmatpush1.msra.mxu0 %v68
    %142 = vmatprep.subr.mxu0 0.0
    %143 = vmatpush1.msra.mxu0 %v69
    %144 = vmatprep.subr.mxu0 0.0
    %145 = vmatpush1.msra.mxu0 %v70
    %146 = vmatprep.mubr.f32.mxu0 %v79
    %147 = vmatmul.mubr.f32.gmra.mrb[0].mxu0 %v75
    %v148 = vpop.f32.mrb[0].mxu0
    %v149 = vadd.f32 0.0, %v148
    %v150 = vpop.f32.mrb[0].mxu0
    %151 = vdwg.mxu0
    %152 = vst [vmem:[#allocation7] sm:$0x1] %v149
    // Predicated region
    $region18: #{tpu_custom_call.1} parent=1 // pred_check
      _
    $region19: #{tpu_custom_call.1} parent=1 // pred_check_branch
      %154 = sbr.rel (0) target = $region21
    $region20: #{tpu_custom_call.1} parent=1 // pred_region
      %s156 = ssub.s32 16, 16
      %157 = vsyncadd [#allocation4], %s156
      %s159 = sshll.u32 [#allocation7], 4
      %s160 = int_to_ptr.vmem [resolvable:$true] %s159
      %162 = dma.vmem_to_hbm [thread:$0]  %s160, 16, %s2, [#allocation4]
    $region21: #{tpu_custom_call.1} parent=1 // pred_fallthru
      _
    // Predicated region
    $region22: #{tpu_custom_call.1} parent=1 // pred_check
      _
    $region23: #{tpu_custom_call.1} parent=1 // pred_check_branch
      %164 = sbr.rel (0) target = $region25
    $region24: #{tpu_custom_call.1} parent=1 // pred_region
      %165 = dma.done [#allocation4], 16
    $region25: #{tpu_custom_call.1} parent=1 // pred_fallthru
      _
    %166 = vsyncpa [#allocation3], 1
    %167 = vsyncpa [#allocation6], 1
    %168 = vsyncpa [#allocation4], 1

</llo_original>
